<compile_context>
chip_gen: v7x
topology: tpu7x:2x2x1
jax: 0.10.0
libtpu: 0.0.40
codegen_flags: <defaults>
</compile_context>

<pallas_src>
import jax
import jax.numpy as jnp
from jax.experimental import pallas as pl
from jax.experimental.pallas import tpu as pltpu

CONTROL_SCALE = 150.0
TEMP_REF = 25.0

PAD = 128   # lane-aligned padding for every Linear dimension
ROWS = 8    # sublane-aligned


def _mpc_kernel(sc_ref,    # SMEM (5,) f32: [current_temp, setpoint, error_integral, prev_control, b4]
                w_ref,     # VMEM (3,128,128) f32/bf16: zero-padded W1,W2,W3 stored (in,out)
                aux_ref,   # VMEM (8,128) f32: rows 0..2 = b1,b2,b3 ; row 3 = w4 row
                o_ref):    # VMEM (1,1) f32: total_control
    # ---- scalar path (sregs): normalization + PID terms ---------------------
    temp_norm = (sc_ref[0] - TEMP_REF) * (1.0 / 50.0)
    setpoint_norm = (sc_ref[1] - TEMP_REF) * (1.0 / 50.0)
    error = setpoint_norm - temp_norm
    control_norm = sc_ref[3] * (1.0 / CONTROL_SCALE)
    pid = 2.0 * error * 50.0 + 0.1 * sc_ref[2]
    b4 = sc_ref[4]

    # ---- build the state row in-register (no host-side state tile / DMA) ----
    lane = jax.lax.broadcasted_iota(jnp.int32, (ROWS, PAD), 1)
    x = jnp.where(lane == 0, temp_norm,
        jnp.where(lane == 1, setpoint_norm,
        jnp.where(lane == 2, error,
        jnp.where(lane == 3, control_norm, 0.0))))
    # All 8 sublane rows carry the same state; only row 0 of the result is read.

    aux = aux_ref[...]          # (8,128) f32: biases + final-layer weight row
    wdt = w_ref.dtype           # bf16 (default) or f32

    # state_encoder: Linear(4,32)+ReLU, Linear(32,16)+ReLU   (MXU, f32 accumulate)
    h = jnp.dot(x.astype(wdt), w_ref[0], preferred_element_type=jnp.float32) + aux[0:1, :]
    h = jnp.maximum(h, 0.0)
    h = jnp.dot(h.astype(wdt), w_ref[1], preferred_element_type=jnp.float32) + aux[1:2, :]
    h = jnp.maximum(h, 0.0)
    # control_predictor: Linear(16,16)+ReLU
    h = jnp.dot(h.astype(wdt), w_ref[2], preferred_element_type=jnp.float32) + aux[2:3, :]
    h = jnp.maximum(h, 0.0)

    # Final Linear(16,1): single valid output column -> VPU multiply + lane
    # reduce (XLU) in f32 instead of another serial MXU push/drain.
    logit = jnp.sum(h * aux[3:4, :], axis=-1, keepdims=True) + b4       # (8,1) f32
    control = jax.nn.sigmoid(logit) * CONTROL_SCALE                      # (8,1)

    total = jnp.clip(control + pid, 0.0, CONTROL_SCALE)
    o_ref[...] = total[0:1, :]                                           # (1,1)


def init_params(key):
    """Deterministic init matching the PyTorch Linear shapes (stored as (in, out))."""
    dims = [(4, 32), (32, 16), (16, 16), (16, 1)]
    params = []
    for i, (fan_in, fan_out) in enumerate(dims):
        kw, kb = jax.random.split(jax.random.fold_in(key, i))
        bound = 1.0 / jnp.sqrt(float(fan_in))
        w = jax.random.uniform(kw, (fan_in, fan_out), jnp.float32, -bound, bound)
        b = jax.random.uniform(kb, (fan_out,), jnp.float32, -bound, bound)
        params.append((w, b))
    return params


def prepare_params(params, dtype=jnp.bfloat16):
    """One-time packing/padding of the MLP parameters (call once, reuse forever).

    dtype: matmul-input dtype for the three MXU layers.  bf16 is recommended on
    v6e/v7x (single-pass MXU, half the weight DMA); use f32 for bit-faithful
    parity with the f32 PyTorch module (and on v5e if preferred).
    """
    (w1, b1), (w2, b2), (w3, b3), (w4, b4) = params

    def pad_w(w):
        out = jnp.zeros((PAD, PAD), dtype)
        return out.at[: w.shape[0], : w.shape[1]].set(w.astype(dtype))

    w_packed = jnp.stack([pad_w(w1), pad_w(w2), pad_w(w3)])     # (3,128,128)

    aux = jnp.zeros((ROWS, PAD), jnp.float32)
    aux = aux.at[0, : b1.shape[0]].set(b1)
    aux = aux.at[1, : b2.shape[0]].set(b2)
    aux = aux.at[2, : b3.shape[0]].set(b3)
    aux = aux.at[3, : w4.shape[0]].set(w4[:, 0])                # final layer as a row

    return w_packed, aux, b4[0].astype(jnp.float32)


@jax.jit
def neural_mpc_forward(prepared, current_temp, setpoint, error_integral, prev_control):
    w_packed, aux, b4 = prepared
    scalars = jnp.stack([
        jnp.asarray(current_temp, jnp.float32),
        jnp.asarray(setpoint, jnp.float32),
        jnp.asarray(error_integral, jnp.float32),
        jnp.asarray(prev_control, jnp.float32),
        b4,
    ])

    vmem = pl.BlockSpec(memory_space=pltpu.MemorySpace.VMEM)
    smem = pl.BlockSpec(memory_space=pltpu.MemorySpace.SMEM)

    out = pl.pallas_call(
        _mpc_kernel,
        out_shape=jax.ShapeDtypeStruct((1, 1), jnp.float32),
        in_specs=[smem, vmem, vmem],
        out_specs=vmem,
    )(scalars, w_packed, aux)

    return out[0, 0]


def reference_forward(params, current_temp, setpoint, error_integral, prev_control):
    """Pure-JAX reference replicating the PyTorch module semantics exactly (f32)."""
    temp_norm = (current_temp - TEMP_REF) / 50.0
    setpoint_norm = (setpoint - TEMP_REF) / 50.0
    error = setpoint_norm - temp_norm
    control_norm = prev_control / CONTROL_SCALE
    x = jnp.stack([temp_norm, setpoint_norm, error, control_norm]).astype(jnp.float32)

    (w1, b1), (w2, b2), (w3, b3), (w4, b4) = params
    h = jnp.maximum(x @ w1 + b1, 0.0)
    h = jnp.maximum(h @ w2 + b2, 0.0)
    h = jnp.maximum(h @ w3 + b3, 0.0)
    control_output = jax.nn.sigmoid(h @ w4 + b4)

    neural_control = jnp.squeeze(control_output) * CONTROL_SCALE
    proportional = 2.0 * error * 50.0
    integral = 0.1 * error_integral
    total = neural_control + proportional + integral
    return jnp.clip(total, 0.0, CONTROL_SCALE)


if __name__ == "__main__":
    key = jax.random.PRNGKey(0)
    params = init_params(key)

    # Scalar controller inputs (0-dim tensors in the PyTorch module).
    k1, k2, k3, k4 = jax.random.split(jax.random.fold_in(key, 123), 4)
    current_temp = 20.0 + 10.0 * jax.random.uniform(k1, (), jnp.float32)   # ~[20, 30] C
    setpoint = 22.0 + 8.0 * jax.random.uniform(k2, (), jnp.float32)        # ~[22, 30] C
    error_integral = 5.0 * jax.random.uniform(k3, (), jnp.float32)
    prev_control = CONTROL_SCALE * jax.random.uniform(k4, (), jnp.float32)

    ref = reference_forward(params, current_temp, setpoint, error_integral, prev_control)

    # f32 path: exact-parity configuration. Tolerance covers the bf16-multipass
    # f32 MXU emulation at the 0..150 output scale.
    prep_f32 = prepare_params(params, dtype=jnp.float32)
    out_f32 = jax.block_until_ready(
        neural_mpc_forward(prep_f32, current_temp, setpoint, error_integral, prev_control))
    assert jnp.allclose(out_f32, ref, atol=1e-2), (out_f32, ref)

    # bf16 path (recommended on v6e/v7x): weights/activations quantized to bf16
    # for the three MXU layers, f32 accumulate + f32 final layer. Loose absolute
    # tolerance (~1.3% of the 150 control scale) accounts for the quantization.
    prep_bf16 = prepare_params(params, dtype=jnp.bfloat16)
    out_bf16 = jax.block_until_ready(
        neural_mpc_forward(prep_bf16, current_temp, setpoint, error_integral, prev_control))
    assert jnp.allclose(out_bf16, ref, atol=2.0), (out_bf16, ref)

    print("KERNEL_OK")
</pallas_src>

<mosaic_0001>
module attributes {stable_mosaic.version = 11 : i64} {
  func.func @_mpc_kernel(%arg0: memref<5xf32, #tpu.memory_space<smem>>, %arg1: memref<3x128x128xf32, #tpu.memory_space<vmem>>, %arg2: memref<8x128xf32, #tpu.memory_space<vmem>>, %arg3: memref<1x1xf32, #tpu.memory_space<vmem>>) attributes {dimension_semantics = [], scalar_prefetch = 0 : i64, scratch_operands = 0 : i64, tpu.core_type = #tpu.core_type<tc>} {
    %c0 = arith.constant 0 : index
    %0 = memref.load %arg0[%c0] : memref<5xf32, #tpu.memory_space<smem>>
    %cst = arith.constant 2.500000e+01 : f32
    %1 = arith.subf %0, %cst : f32
    %cst_0 = arith.constant 2.000000e-02 : f32
    %2 = arith.mulf %1, %cst_0 : f32
    %c1 = arith.constant 1 : index
    %3 = memref.load %arg0[%c1] : memref<5xf32, #tpu.memory_space<smem>>
    %cst_1 = arith.constant 2.500000e+01 : f32
    %4 = arith.subf %3, %cst_1 : f32
    %cst_2 = arith.constant 2.000000e-02 : f32
    %5 = arith.mulf %4, %cst_2 : f32
    %6 = arith.subf %5, %2 : f32
    %c3 = arith.constant 3 : index
    %7 = memref.load %arg0[%c3] : memref<5xf32, #tpu.memory_space<smem>>
    %cst_3 = arith.constant 0.00666666683 : f32
    %8 = arith.mulf %7, %cst_3 : f32
    %cst_4 = arith.constant 2.000000e+00 : f32
    %9 = arith.mulf %cst_4, %6 : f32
    %cst_5 = arith.constant 5.000000e+01 : f32
    %10 = arith.mulf %9, %cst_5 : f32
    %c2 = arith.constant 2 : index
    %11 = memref.load %arg0[%c2] : memref<5xf32, #tpu.memory_space<smem>>
    %cst_6 = arith.constant 1.000000e-01 : f32
    %12 = arith.mulf %cst_6, %11 : f32
    %13 = arith.addf %10, %12 : f32
    %c4 = arith.constant 4 : index
    %14 = memref.load %arg0[%c4] : memref<5xf32, #tpu.memory_space<smem>>
    %15 = tpu.iota {dimensions = array<i32: 1>} : vector<8x128xi32>
    %c0_i32 = arith.constant 0 : i32
    %16 = vector.broadcast %c0_i32 : i32 to vector<8x128xi32>
    %17 = arith.cmpi eq, %15, %16 : vector<8x128xi32>
    %c1_i32 = arith.constant 1 : i32
    %18 = vector.broadcast %c1_i32 : i32 to vector<8x128xi32>
    %19 = arith.cmpi eq, %15, %18 : vector<8x128xi32>
    %c2_i32 = arith.constant 2 : i32
    %20 = vector.broadcast %c2_i32 : i32 to vector<8x128xi32>
    %21 = arith.cmpi eq, %15, %20 : vector<8x128xi32>
    %c3_i32 = arith.constant 3 : i32
    %22 = vector.broadcast %c3_i32 : i32 to vector<8x128xi32>
    %23 = arith.cmpi eq, %15, %22 : vector<8x128xi32>
    %cst_7 = arith.constant 0.000000e+00 : f32
    %24 = vector.broadcast %8 : f32 to vector<8x128xf32>
    %25 = vector.broadcast %cst_7 : f32 to vector<8x128xf32>
    %26 = arith.select %23, %24, %25 : vector<8x128xi1>, vector<8x128xf32>
    %27 = vector.broadcast %6 : f32 to vector<8x128xf32>
    %28 = arith.select %21, %27, %26 : vector<8x128xi1>, vector<8x128xf32>
    %29 = vector.broadcast %5 : f32 to vector<8x128xf32>
    %30 = arith.select %19, %29, %28 : vector<8x128xi1>, vector<8x128xf32>
    %31 = vector.broadcast %2 : f32 to vector<8x128xf32>
    %32 = arith.select %17, %31, %30 : vector<8x128xi1>, vector<8x128xf32>
    %c0_8 = arith.constant 0 : index
    %c0_9 = arith.constant 0 : index
    %33 = vector.load %arg2[%c0_8, %c0_9] : memref<8x128xf32, #tpu.memory_space<vmem>>, vector<8x128xf32>
    %c0_10 = arith.constant 0 : index
    %c0_11 = arith.constant 0 : index
    %c0_12 = arith.constant 0 : index
    %34 = vector.load %arg1[%c0_10, %c0_11, %c0_12] : memref<3x128x128xf32, #tpu.memory_space<vmem>>, vector<1x128x128xf32>
    %35 = vector.shape_cast %34 : vector<1x128x128xf32> to vector<128x128xf32>
    %cst_13 = arith.constant dense<0.000000e+00> : vector<8x128xf32>
    %36 = tpu.matmul %32, %35, %cst_13 {dimension_numbers = #tpu.dot_dimension_numbers<[1], [0], [0], [1], [0, 0, 1, 1], [], []>} : vector<8x128xf32>, vector<128x128xf32>, vector<8x128xf32> -> vector<8x128xf32>
    %37 = vector.extract_strided_slice %33 {offsets = [0, 0], sizes = [1, 128], strides = [1, 1]} : vector<8x128xf32> to vector<1x128xf32>
    %38 = vector.broadcast %37 : vector<1x128xf32> to vector<8x128xf32>
    %39 = arith.addf %36, %38 : vector<8x128xf32>
    %cst_14 = arith.constant 0.000000e+00 : f32
    %40 = vector.broadcast %cst_14 : f32 to vector<8x128xf32>
    %41 = arith.maximumf %39, %40 : vector<8x128xf32>
    %c1_15 = arith.constant 1 : index
    %c0_16 = arith.constant 0 : index
    %c0_17 = arith.constant 0 : index
    %42 = vector.load %arg1[%c1_15, %c0_16, %c0_17] : memref<3x128x128xf32, #tpu.memory_space<vmem>>, vector<1x128x128xf32>
    %43 = vector.shape_cast %42 : vector<1x128x128xf32> to vector<128x128xf32>
    %cst_18 = arith.constant dense<0.000000e+00> : vector<8x128xf32>
    %44 = tpu.matmul %41, %43, %cst_18 {dimension_numbers = #tpu.dot_dimension_numbers<[1], [0], [0], [1], [0, 0, 1, 1], [], []>} : vector<8x128xf32>, vector<128x128xf32>, vector<8x128xf32> -> vector<8x128xf32>
    %45 = vector.extract_strided_slice %33 {offsets = [1, 0], sizes = [1, 128], strides = [1, 1]} : vector<8x128xf32> to vector<1x128xf32>
    %46 = vector.broadcast %45 : vector<1x128xf32> to vector<8x128xf32>
    %47 = arith.addf %44, %46 : vector<8x128xf32>
    %cst_19 = arith.constant 0.000000e+00 : f32
    %48 = vector.broadcast %cst_19 : f32 to vector<8x128xf32>
    %49 = arith.maximumf %47, %48 : vector<8x128xf32>
    %c2_20 = arith.constant 2 : index
    %c0_21 = arith.constant 0 : index
    %c0_22 = arith.constant 0 : index
    %50 = vector.load %arg1[%c2_20, %c0_21, %c0_22] : memref<3x128x128xf32, #tpu.memory_space<vmem>>, vector<1x128x128xf32>
    %51 = vector.shape_cast %50 : vector<1x128x128xf32> to vector<128x128xf32>
    %cst_23 = arith.constant dense<0.000000e+00> : vector<8x128xf32>
    %52 = tpu.matmul %49, %51, %cst_23 {dimension_numbers = #tpu.dot_dimension_numbers<[1], [0], [0], [1], [0, 0, 1, 1], [], []>} : vector<8x128xf32>, vector<128x128xf32>, vector<8x128xf32> -> vector<8x128xf32>
    %53 = vector.extract_strided_slice %33 {offsets = [2, 0], sizes = [1, 128], strides = [1, 1]} : vector<8x128xf32> to vector<1x128xf32>
    %54 = vector.broadcast %53 : vector<1x128xf32> to vector<8x128xf32>
    %55 = arith.addf %52, %54 : vector<8x128xf32>
    %cst_24 = arith.constant 0.000000e+00 : f32
    %56 = vector.broadcast %cst_24 : f32 to vector<8x128xf32>
    %57 = arith.maximumf %55, %56 : vector<8x128xf32>
    %58 = vector.extract_strided_slice %33 {offsets = [3, 0], sizes = [1, 128], strides = [1, 1]} : vector<8x128xf32> to vector<1x128xf32>
    %59 = vector.broadcast %58 : vector<1x128xf32> to vector<8x128xf32>
    %60 = arith.mulf %57, %59 : vector<8x128xf32>
    %cst_25 = arith.constant dense<0.000000e+00> : vector<8xf32>
    %61 = vector.multi_reduction <add>, %60, %cst_25 [1] : vector<8x128xf32> to vector<8xf32>
    %62 = vector.shape_cast %61 : vector<8xf32> to vector<8x1xf32>
    %63 = vector.broadcast %14 : f32 to vector<8x1xf32>
    %64 = arith.addf %62, %63 : vector<8x1xf32>
    %65 = arith.negf %64 : vector<8x1xf32>
    %66 = math.exp %65 : vector<8x1xf32>
    %cst_26 = arith.constant 1.000000e+00 : f32
    %67 = vector.broadcast %cst_26 : f32 to vector<8x1xf32>
    %68 = arith.addf %67, %66 : vector<8x1xf32>
    %69 = arith.divf %67, %68 : vector<8x1xf32>
    %cst_27 = arith.constant 1.500000e+02 : f32
    %70 = vector.broadcast %cst_27 : f32 to vector<8x1xf32>
    %71 = arith.mulf %69, %70 : vector<8x1xf32>
    %72 = vector.broadcast %13 : f32 to vector<8x1xf32>
    %73 = arith.addf %71, %72 : vector<8x1xf32>
    %cst_28 = arith.constant 0.000000e+00 : f32
    %cst_29 = arith.constant 1.500000e+02 : f32
    %74 = vector.broadcast %cst_28 : f32 to vector<8x1xf32>
    %75 = arith.maximumf %74, %73 : vector<8x1xf32>
    %76 = vector.broadcast %cst_29 : f32 to vector<8x1xf32>
    %77 = arith.minimumf %76, %75 : vector<8x1xf32>
    %78 = vector.extract_strided_slice %77 {offsets = [0, 0], sizes = [1, 1], strides = [1, 1]} : vector<8x1xf32> to vector<1x1xf32>
    %c0_30 = arith.constant 0 : index
    %c0_31 = arith.constant 0 : index
    %79 = vector.load %arg3[%c0_30, %c0_31] : memref<1x1xf32, #tpu.memory_space<vmem>>, vector<1x1xf32>
    tpu.vector_store %arg3[%c0_30, %c0_31], %78 {strides = array<i32>} : memref<1x1xf32, #tpu.memory_space<vmem>>, vector<1x1xf32>,
    return
  }
}

</mosaic_0001>

<llo_original>
// kernel: neural_mpc_forward.1
$region0: #{neural_mpc_forward.1}
  #allocation0 [shape = 'u32[]', space=smem, size = 0x4, offset = 0x4, fixed_abs, tag = 'smem constant byte address 0x4 - core index']
  #allocation1 [shape = 'u32[144,128]{1,0:T(1,128)}', space=vmem, size = 0x12000, scoped, tag = 'internal scratch']
  %s0 = inlined_call_operand.vmem [shape: f32[5], index: 0, kind: input, shape index: {}]
  %s1 = inlined_call_operand.hbm [shape: f32[3,128,128], index: 1, kind: input, shape index: {}]
  %s2 = inlined_call_operand.vmem [shape: f32[8,128], index: 2, kind: input, shape index: {}]
  %s3 = inlined_call_operand.hbm [shape: f32[1,1], index: 3, kind: output, shape index: {}]
  %s4 = sld [smem:[#allocation0]]
  $region30: #{neural_mpc_forward.1} parent=0
    _
  %s6 = ssub.s32 1, %s4
  %s7 = scalar_select 0, %s6, %s4
  $region1: #{neural_mpc_forward.1} parent=0
    #allocation2 [shape = 'u8[512]{0}', space=smem, size = 0x200, scoped, tag = 'input window, operand 0, single buffered']
    #allocation3 [shape = 's32[1]{0}', space=sflag, size = 0x4, scoped, tag = 'scoped memory for neural_mpc_forward.1']
    #allocation4 [shape = 's32[1]{0}', space=sflag, size = 0x4, scoped, tag = 'scoped memory for neural_mpc_forward.1']
    #allocation5 [shape = 's32[1]{0}', space=sflag, size = 0x4, scoped, tag = 'scoped memory for neural_mpc_forward.1']
    #allocation6 [shape = 'u8[196608]{0}', space=vmem, size = 0x30000, scoped, tag = 'input window, operand 1, single buffered']
    #allocation7 [shape = 'u8[512]{0}', space=vmem, size = 0x400, scoped, tag = 'output window, operand 0, single buffered']
    %8 = vsyncpa [#allocation5], 0
    %9 = vsyncpa [#allocation3], 0
    %10 = vsyncpa [#allocation4], 0
    // Predicated region
    $region2: #{neural_mpc_forward.1} parent=1 // pred_check
      _
    $region3: #{neural_mpc_forward.1} parent=1 // pred_check_branch
      %12 = sbr.rel (0) target = $region5
    $region4: #{neural_mpc_forward.1} parent=1 // pred_region
      %s14 = ssub.s32 16, 16
      %15 = vsyncadd [#allocation5], %s14
      %s17 = sshll.u32 %s0, 4
      %s18 = int_to_ptr.vmem [resolvable:$true] %s17
      %20 = dma.vmem_to_smem %s18, 16, [#allocation2], [#allocation5]
    $region5: #{neural_mpc_forward.1} parent=1 // pred_fallthru
      _
    // Predicated region
    $region6: #{neural_mpc_forward.1} parent=1 // pred_check
      _
    $region7: #{neural_mpc_forward.1} parent=1 // pred_check_branch
      %22 = sbr.rel (0) target = $region9
    $region8: #{neural_mpc_forward.1} parent=1 // pred_region
      %s24 = ssub.s32 6144, 6144
      %25 = vsyncadd [#allocation3], %s24
      %s26 = sshll.u32 [#allocation6], 4
      %s27 = int_to_ptr.vmem [resolvable:$true] %s26
      %32 = dma.hbm_to_vmem [thread:$0]  %s1, 6144, %s27, [#allocation3], 128, 128, 8
    $region9: #{neural_mpc_forward.1} parent=1 // pred_fallthru
      _
    // Predicated region
    $region10: #{neural_mpc_forward.1} parent=1 // pred_check
      _
    $region11: #{neural_mpc_forward.1} parent=1 // pred_check_branch
      %34 = sbr.rel (0) target = $region13
    $region12: #{neural_mpc_forward.1} parent=1 // pred_region
      _
    $region13: #{neural_mpc_forward.1} parent=1 // pred_fallthru
      _
    // Predicated region
    $region14: #{neural_mpc_forward.1} parent=1 // pred_check
      _
    $region15: #{neural_mpc_forward.1} parent=1 // pred_check_branch
      %36 = sbr.rel (0) target = $region17
    $region16: #{neural_mpc_forward.1} parent=1 // pred_region
      %37 = dma.done [#allocation5], 16
    $region17: #{neural_mpc_forward.1} parent=1 // pred_fallthru
      _
    // Predicated region
    $region18: #{neural_mpc_forward.1} parent=1 // pred_check
      _
    $region19: #{neural_mpc_forward.1} parent=1 // pred_check_branch
      %39 = sbr.rel (0) target = $region21
    $region20: #{neural_mpc_forward.1} parent=1 // pred_region
      %40 = dma.done [#allocation3], 6144
    $region21: #{neural_mpc_forward.1} parent=1 // pred_fallthru
      _
    %41 = sfence
    %s42 = sld [smem:[#allocation2]]
    %s43 = ssub.f32 %s42, 25.0
    %s44 = smul.f32 %s43, 0.02
    %s45 = sld [smem:[#allocation2 + $0x1]]
    %s46 = ssub.f32 %s45, 25.0
    %s47 = smul.f32 %s46, 0.02
    %s48 = ssub.f32 %s47, %s44
    %s49 = sld [smem:[#allocation2 + $0x3]]
    %s50 = smul.f32 %s49, 0.006666667
    %s51 = smul.f32 %s48, 2.0
    %s52 = smul.f32 %s51, 50.0
    %s53 = sld [smem:[#allocation2 + $0x2]]
    %s54 = smul.f32 %s53, 0.1
    %s55 = sadd.f32 %s52, %s54
    %s56 = sld [smem:[#allocation2 + $0x4]]
    %v57 = vlaneseq
    %v58 = vand.u32 %v57, 127
    %vm59 = vcmp.eq.s32.totalorder %v58, 0
    %vm60 = vcmp.eq.s32.totalorder %v58, 1
    %vm61 = vcmp.eq.s32.totalorder %v58, 2
    %vm62 = vcmp.eq.s32.totalorder %v58, 3
    %v63 = vstv %s50
    %v64 = vsel %vm62, %v63, 0.0
    %v65 = vstv %s48
    %v66 = vsel %vm61, %v65, %v64
    %v67 = vstv %s47
    %v68 = vsel %vm60, %v67, %v66
    %v69 = vstv %s44
    %v70 = vsel %vm59, %v69, %v68
    %v71 = vld [vmem:[%s2] sm:$0xff]
    %v72 = vld [vmem:[#allocation6] sm:$0xff]
    %v73 = vld [vmem:[#allocation6 + $0x8] sm:$0xff]
    %v74 = vld [vmem:[#allocation6 + $0x10] sm:$0xff]
    %v75 = vld [vmem:[#allocation6 + $0x18] sm:$0xff]
    %v76 = vld [vmem:[#allocation6 + $0x20] sm:$0xff]
    %v77 = vld [vmem:[#allocation6 + $0x28] sm:$0xff]
    %v78 = vld [vmem:[#allocation6 + $0x30] sm:$0xff]
    %v79 = vld [vmem:[#allocation6 + $0x38] sm:$0xff]
    %v80 = vld [vmem:[#allocation6 + $0x40] sm:$0xff]
    %v81 = vld [vmem:[#allocation6 + $0x48] sm:$0xff]
    %v82 = vld [vmem:[#allocation6 + $0x50] sm:$0xff]
    %v83 = vld [vmem:[#allocation6 + $0x58] sm:$0xff]
    %v84 = vld [vmem:[#allocation6 + $0x60] sm:$0xff]
    %v85 = vld [vmem:[#allocation6 + $0x68] sm:$0xff]
    %v86 = vld [vmem:[#allocation6 + $0x70] sm:$0xff]
    %v87 = vld [vmem:[#allocation6 + $0x78] sm:$0xff]
    %v88 = vlaneseq
    %v89 = vshrl.u32 %v88, 7
    %v90 = vsub.s32 0, %v89
    %v91 = vrot.slane %v71, %v90
    %92 = vmatprep.subr.mxu0 0.0
    %93 = vmatpush1.msra.mxu0 %v72
    %94 = vmatprep.subr.mxu0 0.0
    %95 = vmatpush1.msra.mxu0 %v73
    %96 = vmatprep.subr.mxu0 0.0
    %97 = vmatpush1.msra.mxu0 %v74
    %98 = vmatprep.subr.mxu0 0.0
    %99 = vmatpush1.msra.mxu0 %v75
    %100 = vmatprep.subr.mxu0 0.0
    %101 = vmatpush1.msra.mxu0 %v76
    %102 = vmatprep.subr.mxu0 0.0
    %103 = vmatpush1.msra.mxu0 %v77
    %104 = vmatprep.subr.mxu0 0.0
    %105 = vmatpush1.msra.mxu0 %v78
    %106 = vmatprep.subr.mxu0 0.0
    %107 = vmatpush1.msra.mxu0 %v79
    %108 = vmatprep.subr.mxu0 0.0
    %109 = vmatpush1.msra.mxu0 %v80
    %110 = vmatprep.subr.mxu0 0.0
    %111 = vmatpush1.msra.mxu0 %v81
    %112 = vmatprep.subr.mxu0 0.0
    %113 = vmatpush1.msra.mxu0 %v82
    %114 = vmatprep.subr.mxu0 0.0
    %115 = vmatpush1.msra.mxu0 %v83
    %116 = vmatprep.subr.mxu0 0.0
    %117 = vmatpush1.msra.mxu0 %v84
    %118 = vmatprep.subr.mxu0 0.0
    %119 = vmatpush1.msra.mxu0 %v85
    %120 = vmatprep.subr.mxu0 0.0
    %121 = vmatpush1.msra.mxu0 %v86
    %122 = vmatprep.subr.mxu0 0.0
    %123 = vmatpush1.msra.mxu0 %v87
    %124 = vmatprep.subr.mxu0 0.0
    %125 = vmatpush1.msra.mxu0 0.0
    %126 = vmatprep.subr.mxu0 0.0
    %127 = vmatpush1.msra.mxu0 0.0
    %128 = vmatprep.subr.mxu0 0.0
    %129 = vmatpush1.msra.mxu0 0.0
    %130 = vmatprep.subr.mxu0 0.0
    %131 = vmatpush1.msra.mxu0 0.0
    %132 = vmatprep.subr.mxu0 0.0
    %133 = vmatpush1.msra.mxu0 0.0
    %134 = vmatprep.subr.mxu0 0.0
    %135 = vmatpush1.msra.mxu0 0.0
    %136 = vmatprep.subr.mxu0 0.0
    %137 = vmatpush1.msra.mxu0 0.0
    %138 = vmatprep.subr.mxu0 0.0
    %139 = vmatpush1.msra.mxu0 0.0
    %140 = vmatprep.subr.mxu0 0.0
    %141 = vmatpush1.msra.mxu0 0.0
    %142 = vmatprep.subr.mxu0 0.0
    %143 = vmatpush1.msra.mxu0 0.0
    %144 = vmatprep.subr.mxu0 0.0
    %145 = vmatpush1.msra.mxu0 0.0
    %146 = vmatprep.subr.mxu0 0.0
    %147 = vmatpush1.msra.mxu0 0.0
    %148 = vmatprep.subr.mxu0 0.0
    %149 = vmatpush1.msra.mxu0 0.0
    %150 = vmatprep.subr.mxu0 0.0
    %151 = vmatpush1.msra.mxu0 0.0
    %152 = vmatprep.subr.mxu0 0.0
    %153 = vmatpush1.msra.mxu0 0.0
    %154 = vmatprep.subr.mxu0 0.0
    %155 = vmatpush1.msra.mxu0 0.0
    %156 = vmatprep.mubr.f32.mxu0 0.0
    %157 = vmatmul.mubr.f32.gmra.mrb[0].mxu0 %v70
    %v158 = vpop.f32.mrb[0].mxu0
    %v159 = vadd.f32 %v91, %v158
    %v160 = vpop.f32.mrb[0].mxu0
    %161 = vdwg.mxu0
    %v162 = vmax.f32 %v159, 0.0
    %s163 = scalar_lea.vmem [#allocation6], 128
    %v164 = vld [vmem:[%s163] sm:$0xff]
    %v165 = vld [vmem:[%s163 + $0x8] sm:$0xff]
    %v166 = vld [vmem:[%s163 + $0x10] sm:$0xff]
    %v167 = vld [vmem:[%s163 + $0x18] sm:$0xff]
    %v168 = vld [vmem:[%s163 + $0x20] sm:$0xff]
    %v169 = vld [vmem:[%s163 + $0x28] sm:$0xff]
    %v170 = vld [vmem:[%s163 + $0x30] sm:$0xff]
    %v171 = vld [vmem:[%s163 + $0x38] sm:$0xff]
    %v172 = vld [vmem:[%s163 + $0x40] sm:$0xff]
    %v173 = vld [vmem:[%s163 + $0x48] sm:$0xff]
    %v174 = vld [vmem:[%s163 + $0x50] sm:$0xff]
    %v175 = vld [vmem:[%s163 + $0x58] sm:$0xff]
    %v176 = vld [vmem:[%s163 + $0x60] sm:$0xff]
    %v177 = vld [vmem:[%s163 + $0x68] sm:$0xff]
    %v178 = vld [vmem:[%s163 + $0x70] sm:$0xff]
    %v179 = vld [vmem:[%s163 + $0x78] sm:$0xff]
    %v180 = vlaneseq
    %v181 = vshrl.u32 %v180, 7
    %v182 = vsub.s32 1, %v181
    %v183 = vrot.slane %v71, %v182
    %184 = vmatprep.subr.mxu0 0.0
    %185 = vmatpush1.msra.mxu0 %v164
    %186 = vmatprep.subr.mxu0 0.0
    %187 = vmatpush1.msra.mxu0 %v165
    %188 = vmatprep.subr.mxu0 0.0
    %189 = vmatpush1.msra.mxu0 %v166
    %190 = vmatprep.subr.mxu0 0.0
    %191 = vmatpush1.msra.mxu0 %v167
    %192 = vmatprep.subr.mxu0 0.0
    %193 = vmatpush1.msra.mxu0 %v168
    %194 = vmatprep.subr.mxu0 0.0
    %195 = vmatpush1.msra.mxu0 %v169
    %196 = vmatprep.subr.mxu0 0.0
    %197 = vmatpush1.msra.mxu0 %v170
    %198 = vmatprep.subr.mxu0 0.0
    %199 = vmatpush1.msra.mxu0 %v171
    %200 = vmatprep.subr.mxu0 0.0
    %201 = vmatpush1.msra.mxu0 %v172
    %202 = vmatprep.subr.mxu0 0.0
    %203 = vmatpush1.msra.mxu0 %v173
    %204 = vmatprep.subr.mxu0 0.0
    %205 = vmatpush1.msra.mxu0 %v174
    %206 = vmatprep.subr.mxu0 0.0
    %207 = vmatpush1.msra.mxu0 %v175
    %208 = vmatprep.subr.mxu0 0.0
    %209 = vmatpush1.msra.mxu0 %v176
    %210 = vmatprep.subr.mxu0 0.0
    %211 = vmatpush1.msra.mxu0 %v177
    %212 = vmatprep.subr.mxu0 0.0
    %213 = vmatpush1.msra.mxu0 %v178
    %214 = vmatprep.subr.mxu0 0.0
    %215 = vmatpush1.msra.mxu0 %v179
    %216 = vmatprep.subr.mxu0 0.0
    %217 = vmatpush1.msra.mxu0 0.0
    %218 = vmatprep.subr.mxu0 0.0
    %219 = vmatpush1.msra.mxu0 0.0
    %220 = vmatprep.subr.mxu0 0.0
    %221 = vmatpush1.msra.mxu0 0.0
    %222 = vmatprep.subr.mxu0 0.0
    %223 = vmatpush1.msra.mxu0 0.0
    %224 = vmatprep.subr.mxu0 0.0
    %225 = vmatpush1.msra.mxu0 0.0
    %226 = vmatprep.subr.mxu0 0.0
    %227 = vmatpush1.msra.mxu0 0.0
    %228 = vmatprep.subr.mxu0 0.0
    %229 = vmatpush1.msra.mxu0 0.0
    %230 = vmatprep.subr.mxu0 0.0
    %231 = vmatpush1.msra.mxu0 0.0
    %232 = vmatprep.subr.mxu0 0.0
    %233 = vmatpush1.msra.mxu0 0.0
    %234 = vmatprep.subr.mxu0 0.0
    %235 = vmatpush1.msra.mxu0 0.0
    %236 = vmatprep.subr.mxu0 0.0
    %237 = vmatpush1.msra.mxu0 0.0
    %238 = vmatprep.subr.mxu0 0.0
    %239 = vmatpush1.msra.mxu0 0.0
    %240 = vmatprep.subr.mxu0 0.0
    %241 = vmatpush1.msra.mxu0 0.0
    %242 = vmatprep.subr.mxu0 0.0
    %243 = vmatpush1.msra.mxu0 0.0
    %244 = vmatprep.subr.mxu0 0.0
    %245 = vmatpush1.msra.mxu0 0.0
    %246 = vmatprep.subr.mxu0 0.0
    %247 = vmatpush1.msra.mxu0 0.0
    %248 = vmatprep.mubr.f32.mxu0 0.0
    %249 = vmatmul.mubr.f32.gmra.mrb[0].mxu0 %v162
    %v250 = vpop.f32.mrb[0].mxu0
    %v251 = vadd.f32 %v183, %v250
    %v252 = vpop.f32.mrb[0].mxu0
    %253 = vdwg.mxu0
    %v254 = vmax.f32 %v251, 0.0
    %s255 = scalar_lea.vmem [#allocation6], 256
    %v256 = vld [vmem:[%s255] sm:$0xff]
    %v257 = vld [vmem:[%s255 + $0x8] sm:$0xff]
    %v258 = vld [vmem:[%s255 + $0x10] sm:$0xff]
    %v259 = vld [vmem:[%s255 + $0x18] sm:$0xff]
    %v260 = vld [vmem:[%s255 + $0x20] sm:$0xff]
    %v261 = vld [vmem:[%s255 + $0x28] sm:$0xff]
    %v262 = vld [vmem:[%s255 + $0x30] sm:$0xff]
    %v263 = vld [vmem:[%s255 + $0x38] sm:$0xff]
    %v264 = vld [vmem:[%s255 + $0x40] sm:$0xff]
    %v265 = vld [vmem:[%s255 + $0x48] sm:$0xff]
    %v266 = vld [vmem:[%s255 + $0x50] sm:$0xff]
    %v267 = vld [vmem:[%s255 + $0x58] sm:$0xff]
    %v268 = vld [vmem:[%s255 + $0x60] sm:$0xff]
    %v269 = vld [vmem:[%s255 + $0x68] sm:$0xff]
    %v270 = vld [vmem:[%s255 + $0x70] sm:$0xff]
    %v271 = vld [vmem:[%s255 + $0x78] sm:$0xff]
    %v272 = vlaneseq
    %v273 = vshrl.u32 %v272, 7
    %v274 = vsub.s32 2, %v273
    %v275 = vrot.slane %v71, %v274
    %276 = vmatprep.subr.mxu0 0.0
    %277 = vmatpush1.msra.mxu0 %v256
    %278 = vmatprep.subr.mxu0 0.0
    %279 = vmatpush1.msra.mxu0 %v257
    %280 = vmatprep.subr.mxu0 0.0
    %281 = vmatpush1.msra.mxu0 %v258
    %282 = vmatprep.subr.mxu0 0.0
    %283 = vmatpush1.msra.mxu0 %v259
    %284 = vmatprep.subr.mxu0 0.0
    %285 = vmatpush1.msra.mxu0 %v260
    %286 = vmatprep.subr.mxu0 0.0
    %287 = vmatpush1.msra.mxu0 %v261
    %288 = vmatprep.subr.mxu0 0.0
    %289 = vmatpush1.msra.mxu0 %v262
    %290 = vmatprep.subr.mxu0 0.0
    %291 = vmatpush1.msra.mxu0 %v263
    %292 = vmatprep.subr.mxu0 0.0
    %293 = vmatpush1.msra.mxu0 %v264
    %294 = vmatprep.subr.mxu0 0.0
    %295 = vmatpush1.msra.mxu0 %v265
    %296 = vmatprep.subr.mxu0 0.0
    %297 = vmatpush1.msra.mxu0 %v266
    %298 = vmatprep.subr.mxu0 0.0
    %299 = vmatpush1.msra.mxu0 %v267
    %300 = vmatprep.subr.mxu0 0.0
    %301 = vmatpush1.msra.mxu0 %v268
    %302 = vmatprep.subr.mxu0 0.0
    %303 = vmatpush1.msra.mxu0 %v269
    %304 = vmatprep.subr.mxu0 0.0
    %305 = vmatpush1.msra.mxu0 %v270
    %306 = vmatprep.subr.mxu0 0.0
    %307 = vmatpush1.msra.mxu0 %v271
    %308 = vmatprep.subr.mxu0 0.0
    %309 = vmatpush1.msra.mxu0 0.0
    %310 = vmatprep.subr.mxu0 0.0
    %311 = vmatpush1.msra.mxu0 0.0
    %312 = vmatprep.subr.mxu0 0.0
    %313 = vmatpush1.msra.mxu0 0.0
    %314 = vmatprep.subr.mxu0 0.0
    %315 = vmatpush1.msra.mxu0 0.0
    %316 = vmatprep.subr.mxu0 0.0
    %317 = vmatpush1.msra.mxu0 0.0
    %318 = vmatprep.subr.mxu0 0.0
    %319 = vmatpush1.msra.mxu0 0.0
    %320 = vmatprep.subr.mxu0 0.0
    %321 = vmatpush1.msra.mxu0 0.0
    %322 = vmatprep.subr.mxu0 0.0
    %323 = vmatpush1.msra.mxu0 0.0
    %324 = vmatprep.subr.mxu0 0.0
    %325 = vmatpush1.msra.mxu0 0.0
    %326 = vmatprep.subr.mxu0 0.0
    %327 = vmatpush1.msra.mxu0 0.0
    %328 = vmatprep.subr.mxu0 0.0
    %329 = vmatpush1.msra.mxu0 0.0
    %330 = vmatprep.subr.mxu0 0.0
    %331 = vmatpush1.msra.mxu0 0.0
    %332 = vmatprep.subr.mxu0 0.0
    %333 = vmatpush1.msra.mxu0 0.0
    %334 = vmatprep.subr.mxu0 0.0
    %335 = vmatpush1.msra.mxu0 0.0
    %336 = vmatprep.subr.mxu0 0.0
    %337 = vmatpush1.msra.mxu0 0.0
    %338 = vmatprep.subr.mxu0 0.0
    %339 = vmatpush1.msra.mxu0 0.0
    %340 = vmatprep.mubr.f32.mxu0 0.0
    %341 = vmatmul.mubr.f32.gmra.mrb[0].mxu0 %v254
    %v342 = vpop.f32.mrb[0].mxu0
    %v343 = vadd.f32 %v275, %v342
    %v344 = vpop.f32.mrb[0].mxu0
    %345 = vdwg.mxu0
    %v346 = vmax.f32 %v343, 0.0
    %v347 = vlaneseq
    %v348 = vshrl.u32 %v347, 7
    %v349 = vsub.s32 3, %v348
    %v350 = vrot.slane %v71, %v349
    %v351 = vmul.f32 %v346, %v350
    %352 = vadd.xlane.f32.xlu0 %v351
    %v353 = vpop.xlane.xlu0 %352
    %v354 = vstv %s56
    %v355 = vadd.f32 %v353, %v354
    %v356 = vxor.u32 %v355, 2147483648
    %v357 = vmul.f32 %v356, 1.442695
    %v358 = vpow.pop %v357
    %v359 = vadd.f32 %v358, 1.0
    %v360 = vrcp.pop %v359
    %v361 = vmul.f32 1.0, %v360
    %v362 = vmul.f32 %v361, 150.0
    %v363 = vstv %s55
    %v364 = vadd.f32 %v362, %v363
    %v365 = vmax.f32 %v364, 0.0
    %v366 = vmin.f32 %v365, 150.0
    %vm367 = vcmask 0
    %368 = vst.msk [vmem:[#allocation7] sm:$0x1] %vm367, %v366
    // Predicated region
    $region22: #{neural_mpc_forward.1} parent=1 // pred_check
      _
    $region23: #{neural_mpc_forward.1} parent=1 // pred_check_branch
      %370 = sbr.rel (0) target = $region25
    $region24: #{neural_mpc_forward.1} parent=1 // pred_region
      %s372 = ssub.s32 16, 16
      %373 = vsyncadd [#allocation4], %s372
      %s375 = sshll.u32 [#allocation7], 4
      %s376 = int_to_ptr.vmem [resolvable:$true] %s375
      %378 = dma.vmem_to_hbm [thread:$0]  %s376, 16, %s3, [#allocation4]
    $region25: #{neural_mpc_forward.1} parent=1 // pred_fallthru
      _
    // Predicated region
    $region26: #{neural_mpc_forward.1} parent=1 // pred_check
      _
    $region27: #{neural_mpc_forward.1} parent=1 // pred_check_branch
      %380 = sbr.rel (0) target = $region29
    $region28: #{neural_mpc_forward.1} parent=1 // pred_region
      %381 = dma.done [#allocation4], 16
    $region29: #{neural_mpc_forward.1} parent=1 // pred_fallthru
      _
    %382 = vsyncpa [#allocation3], 1
    %383 = vsyncpa [#allocation4], 1
    %384 = vsyncpa [#allocation5], 1

</llo_original>
